<compile_context>
chip_gen: v7x
topology: tpu7x:2x2x1
jax: 0.10.0
libtpu: 0.0.40
codegen_flags: <defaults>
</compile_context>

<pallas_src>
import math

import jax
import jax.numpy as jnp
from jax.experimental import pallas as pl
from jax.experimental.pallas import tpu as pltpu


DIM = 64                       # "dimension = len(features)" from the script
PAD = 128                      # lane-dense padded feature width
LAYER_DIMS = [DIM, DIM // 2, DIM // 4, DIM // 8, DIM // 4, DIM // 2, DIM]
N_LAYERS = 6
BATCH = 256                    # demo batch (multiple of TILE_B)
TILE_B = 128                   # batch rows per grid step


def autoencoder_kernel(x_ref, w_ref, b_ref, o_ref):
    """x_ref: (TB, 64) f32; w_ref: (6, 128, 128) bf16; b_ref: (6, 1, 128) f32;
    o_ref: (TB, 128) f32."""
    # In-kernel bf16 cast of the input tile (one VPU op).
    h = x_ref[...].astype(jnp.bfloat16)
    # Layer 0: true K = 64 -> static slice of the padded weight slab.
    y = jnp.dot(h, w_ref[0, :DIM, :], preferred_element_type=jnp.float32)  # MXU, f32 acc
    h_f32 = jnp.maximum(y + b_ref[0], 0.0)                                 # VPU, f32
    h = h_f32.astype(jnp.bfloat16)
    for i in range(1, N_LAYERS):              # static Python loop -> fully unrolled
        y = jnp.dot(h, w_ref[i], preferred_element_type=jnp.float32)       # MXU, f32 acc
        h_f32 = jnp.maximum(y + b_ref[i], 0.0)                             # VPU, f32
        h = h_f32.astype(jnp.bfloat16)
    o_ref[...] = h_f32.astype(o_ref.dtype)    # 128-lane-dense store


def make_params(key):
    """PyTorch nn.Linear default init: U(-1/sqrt(fan_in), +1/sqrt(fan_in)).

    Returns the per-layer (w, b) list (for the reference) plus the packed,
    zero-padded 128-wide slabs consumed by the kernel.
    """
    w_all = jnp.zeros((N_LAYERS, PAD, PAD), jnp.float32)
    b_all = jnp.zeros((N_LAYERS, 1, PAD), jnp.float32)
    params = []
    for i in range(N_LAYERS):
        fan_in, fan_out = LAYER_DIMS[i], LAYER_DIMS[i + 1]
        key, kw, kb = jax.random.split(key, 3)
        bound = 1.0 / math.sqrt(fan_in)
        # Stored as [in, out] (== PyTorch weight.T) so the kernel computes h @ W + b.
        w = jax.random.uniform(kw, (fan_in, fan_out), jnp.float32, -bound, bound)
        b = jax.random.uniform(kb, (fan_out,), jnp.float32, -bound, bound)
        params.append((w, b))
        w_all = w_all.at[i, :fan_in, :fan_out].set(w)
        b_all = b_all.at[i, 0, :fan_out].set(b)
    return params, w_all.astype(jnp.bfloat16), b_all


def autoencoder_forward(x, w_all, b_all, *, tile_b=TILE_B):
    B, D = x.shape
    assert D == DIM
    assert B % tile_b == 0, "demo assumes batch is a multiple of TILE_B"
    n_tiles = B // tile_b

    # Advisory estimate using the padded shapes actually executed.
    flops = 2 * B * (DIM * PAD + (N_LAYERS - 1) * PAD * PAD)
    bytes_accessed = (B * DIM * 4          # f32 input
                      + w_all.size * 2     # bf16 weights (DMA'd once, resident)
                      + b_all.size * 4     # f32 biases
                      + B * PAD * 4)       # f32 output

    out = pl.pallas_call(
        autoencoder_kernel,
        out_shape=jax.ShapeDtypeStruct((B, PAD), jnp.float32),
        grid=(n_tiles,),
        in_specs=[
            pl.BlockSpec((tile_b, DIM), lambda i: (i, 0)),            # x tile per step
            pl.BlockSpec((N_LAYERS, PAD, PAD), lambda i: (0, 0, 0)),  # weights: resident
            pl.BlockSpec((N_LAYERS, 1, PAD), lambda i: (0, 0, 0)),    # biases: resident
        ],
        out_specs=pl.BlockSpec((tile_b, PAD), lambda i: (i, 0)),
        compiler_params=pltpu.CompilerParams(
            dimension_semantics=("parallel",)),       # v7x: shard batch tiles over 2 TCs
        cost_estimate=pl.CostEstimate(
            flops=flops, transcendentals=0, bytes_accessed=bytes_accessed),
    )(x, w_all, b_all)
    # Padded columns 64..127 are exactly zero; return the true DIM-wide output.
    return out[:, :DIM]


def reference_forward(x, params):
    """Pure-JAX reference following the same bf16-matmul / f32-epilogue path."""
    h = x.astype(jnp.bfloat16)
    h_f32 = None
    for (w, b) in params:
        y = jnp.dot(h, w.astype(jnp.bfloat16), preferred_element_type=jnp.float32)
        h_f32 = jnp.maximum(y + b[None, :], 0.0)
        h = h_f32.astype(jnp.bfloat16)
    return h_f32


if __name__ == "__main__":
    key = jax.random.PRNGKey(0)
    key, kx = jax.random.split(key)
    x = jax.random.normal(kx, (BATCH, DIM), dtype=jnp.float32)
    params, w_all, b_all = make_params(key)

    out = autoencoder_forward(x, w_all, b_all)
    out = jax.block_until_ready(out)

    ref = reference_forward(x, params)
    assert out.shape == (BATCH, DIM)
    assert jnp.allclose(out, ref, atol=5e-3, rtol=5e-3), "mismatch vs reference"

    print("KERNEL_OK")
</pallas_src>

<mosaic_0001>
module attributes {stable_mosaic.version = 11 : i64} {
  func.func @autoencoder_kernel(%arg0: i32, %arg1: memref<128x64xf32, #tpu.memory_space<vmem>>, %arg2: memref<6x128x128xbf16, #tpu.memory_space<vmem>>, %arg3: memref<6x1x128xf32, #tpu.memory_space<vmem>>, %arg4: memref<128x128xf32, #tpu.memory_space<vmem>>) attributes {dimension_semantics = [#tpu.dimension_semantics<parallel>], iteration_bounds = array<i64: 2>, scalar_prefetch = 0 : i64, scratch_operands = 0 : i64, tpu.core_type = #tpu.core_type<tc>, window_params = [{transform_indices = @transform_0, window_bounds = array<i64: 128, 64>}, {pipeline_mode = #tpu.pipeline_mode<synchronous>, transform_indices = @transform_1, window_bounds = array<i64: 6, 128, 128>}, {pipeline_mode = #tpu.pipeline_mode<synchronous>, transform_indices = @transform_2, window_bounds = array<i64: 6, 1, 128>}, {transform_indices = @transform_3, window_bounds = array<i64: 128, 128>}]} {
    %c0 = arith.constant 0 : index
    %c0_0 = arith.constant 0 : index
    %0 = vector.load %arg1[%c0, %c0_0] : memref<128x64xf32, #tpu.memory_space<vmem>>, vector<128x64xf32>
    %1 = arith.truncf %0 : vector<128x64xf32> to vector<128x64xbf16>
    %c0_1 = arith.constant 0 : index
    %c0_2 = arith.constant 0 : index
    %c0_3 = arith.constant 0 : index
    %2 = vector.load %arg2[%c0_1, %c0_2, %c0_3] : memref<6x128x128xbf16, #tpu.memory_space<vmem>>, vector<1x64x128xbf16>
    %3 = vector.shape_cast %2 : vector<1x64x128xbf16> to vector<64x128xbf16>
    %cst = arith.constant dense<0.000000e+00> : vector<128x128xf32>
    %4 = tpu.matmul %1, %3, %cst {dimension_numbers = #tpu.dot_dimension_numbers<[1], [0], [0], [1], [0, 0, 1, 1], [], []>} : vector<128x64xbf16>, vector<64x128xbf16>, vector<128x128xf32> -> vector<128x128xf32>
    %c0_4 = arith.constant 0 : index
    %c0_5 = arith.constant 0 : index
    %c0_6 = arith.constant 0 : index
    %5 = vector.load %arg3[%c0_4, %c0_5, %c0_6] : memref<6x1x128xf32, #tpu.memory_space<vmem>>, vector<1x1x128xf32>
    %6 = vector.shape_cast %5 : vector<1x1x128xf32> to vector<1x128xf32>
    %7 = vector.broadcast %6 : vector<1x128xf32> to vector<128x128xf32>
    %8 = arith.addf %4, %7 : vector<128x128xf32>
    %cst_7 = arith.constant 0.000000e+00 : f32
    %9 = vector.broadcast %cst_7 : f32 to vector<128x128xf32>
    %10 = arith.maximumf %8, %9 : vector<128x128xf32>
    %11 = arith.truncf %10 : vector<128x128xf32> to vector<128x128xbf16>
    %c1 = arith.constant 1 : index
    %c0_8 = arith.constant 0 : index
    %c0_9 = arith.constant 0 : index
    %12 = vector.load %arg2[%c1, %c0_8, %c0_9] : memref<6x128x128xbf16, #tpu.memory_space<vmem>>, vector<1x128x128xbf16>
    %13 = vector.shape_cast %12 : vector<1x128x128xbf16> to vector<128x128xbf16>
    %cst_10 = arith.constant dense<0.000000e+00> : vector<128x128xf32>
    %14 = tpu.matmul %11, %13, %cst_10 {dimension_numbers = #tpu.dot_dimension_numbers<[1], [0], [0], [1], [0, 0, 1, 1], [], []>} : vector<128x128xbf16>, vector<128x128xbf16>, vector<128x128xf32> -> vector<128x128xf32>
    %c1_11 = arith.constant 1 : index
    %c0_12 = arith.constant 0 : index
    %c0_13 = arith.constant 0 : index
    %15 = vector.load %arg3[%c1_11, %c0_12, %c0_13] : memref<6x1x128xf32, #tpu.memory_space<vmem>>, vector<1x1x128xf32>
    %16 = vector.shape_cast %15 : vector<1x1x128xf32> to vector<1x128xf32>
    %17 = vector.broadcast %16 : vector<1x128xf32> to vector<128x128xf32>
    %18 = arith.addf %14, %17 : vector<128x128xf32>
    %cst_14 = arith.constant 0.000000e+00 : f32
    %19 = vector.broadcast %cst_14 : f32 to vector<128x128xf32>
    %20 = arith.maximumf %18, %19 : vector<128x128xf32>
    %21 = arith.truncf %20 : vector<128x128xf32> to vector<128x128xbf16>
    %c2 = arith.constant 2 : index
    %c0_15 = arith.constant 0 : index
    %c0_16 = arith.constant 0 : index
    %22 = vector.load %arg2[%c2, %c0_15, %c0_16] : memref<6x128x128xbf16, #tpu.memory_space<vmem>>, vector<1x128x128xbf16>
    %23 = vector.shape_cast %22 : vector<1x128x128xbf16> to vector<128x128xbf16>
    %cst_17 = arith.constant dense<0.000000e+00> : vector<128x128xf32>
    %24 = tpu.matmul %21, %23, %cst_17 {dimension_numbers = #tpu.dot_dimension_numbers<[1], [0], [0], [1], [0, 0, 1, 1], [], []>} : vector<128x128xbf16>, vector<128x128xbf16>, vector<128x128xf32> -> vector<128x128xf32>
    %c2_18 = arith.constant 2 : index
    %c0_19 = arith.constant 0 : index
    %c0_20 = arith.constant 0 : index
    %25 = vector.load %arg3[%c2_18, %c0_19, %c0_20] : memref<6x1x128xf32, #tpu.memory_space<vmem>>, vector<1x1x128xf32>
    %26 = vector.shape_cast %25 : vector<1x1x128xf32> to vector<1x128xf32>
    %27 = vector.broadcast %26 : vector<1x128xf32> to vector<128x128xf32>
    %28 = arith.addf %24, %27 : vector<128x128xf32>
    %cst_21 = arith.constant 0.000000e+00 : f32
    %29 = vector.broadcast %cst_21 : f32 to vector<128x128xf32>
    %30 = arith.maximumf %28, %29 : vector<128x128xf32>
    %31 = arith.truncf %30 : vector<128x128xf32> to vector<128x128xbf16>
    %c3 = arith.constant 3 : index
    %c0_22 = arith.constant 0 : index
    %c0_23 = arith.constant 0 : index
    %32 = vector.load %arg2[%c3, %c0_22, %c0_23] : memref<6x128x128xbf16, #tpu.memory_space<vmem>>, vector<1x128x128xbf16>
    %33 = vector.shape_cast %32 : vector<1x128x128xbf16> to vector<128x128xbf16>
    %cst_24 = arith.constant dense<0.000000e+00> : vector<128x128xf32>
    %34 = tpu.matmul %31, %33, %cst_24 {dimension_numbers = #tpu.dot_dimension_numbers<[1], [0], [0], [1], [0, 0, 1, 1], [], []>} : vector<128x128xbf16>, vector<128x128xbf16>, vector<128x128xf32> -> vector<128x128xf32>
    %c3_25 = arith.constant 3 : index
    %c0_26 = arith.constant 0 : index
    %c0_27 = arith.constant 0 : index
    %35 = vector.load %arg3[%c3_25, %c0_26, %c0_27] : memref<6x1x128xf32, #tpu.memory_space<vmem>>, vector<1x1x128xf32>
    %36 = vector.shape_cast %35 : vector<1x1x128xf32> to vector<1x128xf32>
    %37 = vector.broadcast %36 : vector<1x128xf32> to vector<128x128xf32>
    %38 = arith.addf %34, %37 : vector<128x128xf32>
    %cst_28 = arith.constant 0.000000e+00 : f32
    %39 = vector.broadcast %cst_28 : f32 to vector<128x128xf32>
    %40 = arith.maximumf %38, %39 : vector<128x128xf32>
    %41 = arith.truncf %40 : vector<128x128xf32> to vector<128x128xbf16>
    %c4 = arith.constant 4 : index
    %c0_29 = arith.constant 0 : index
    %c0_30 = arith.constant 0 : index
    %42 = vector.load %arg2[%c4, %c0_29, %c0_30] : memref<6x128x128xbf16, #tpu.memory_space<vmem>>, vector<1x128x128xbf16>
    %43 = vector.shape_cast %42 : vector<1x128x128xbf16> to vector<128x128xbf16>
    %cst_31 = arith.constant dense<0.000000e+00> : vector<128x128xf32>
    %44 = tpu.matmul %41, %43, %cst_31 {dimension_numbers = #tpu.dot_dimension_numbers<[1], [0], [0], [1], [0, 0, 1, 1], [], []>} : vector<128x128xbf16>, vector<128x128xbf16>, vector<128x128xf32> -> vector<128x128xf32>
    %c4_32 = arith.constant 4 : index
    %c0_33 = arith.constant 0 : index
    %c0_34 = arith.constant 0 : index
    %45 = vector.load %arg3[%c4_32, %c0_33, %c0_34] : memref<6x1x128xf32, #tpu.memory_space<vmem>>, vector<1x1x128xf32>
    %46 = vector.shape_cast %45 : vector<1x1x128xf32> to vector<1x128xf32>
    %47 = vector.broadcast %46 : vector<1x128xf32> to vector<128x128xf32>
    %48 = arith.addf %44, %47 : vector<128x128xf32>
    %cst_35 = arith.constant 0.000000e+00 : f32
    %49 = vector.broadcast %cst_35 : f32 to vector<128x128xf32>
    %50 = arith.maximumf %48, %49 : vector<128x128xf32>
    %51 = arith.truncf %50 : vector<128x128xf32> to vector<128x128xbf16>
    %c5 = arith.constant 5 : index
    %c0_36 = arith.constant 0 : index
    %c0_37 = arith.constant 0 : index
    %52 = vector.load %arg2[%c5, %c0_36, %c0_37] : memref<6x128x128xbf16, #tpu.memory_space<vmem>>, vector<1x128x128xbf16>
    %53 = vector.shape_cast %52 : vector<1x128x128xbf16> to vector<128x128xbf16>
    %cst_38 = arith.constant dense<0.000000e+00> : vector<128x128xf32>
    %54 = tpu.matmul %51, %53, %cst_38 {dimension_numbers = #tpu.dot_dimension_numbers<[1], [0], [0], [1], [0, 0, 1, 1], [], []>} : vector<128x128xbf16>, vector<128x128xbf16>, vector<128x128xf32> -> vector<128x128xf32>
    %c5_39 = arith.constant 5 : index
    %c0_40 = arith.constant 0 : index
    %c0_41 = arith.constant 0 : index
    %55 = vector.load %arg3[%c5_39, %c0_40, %c0_41] : memref<6x1x128xf32, #tpu.memory_space<vmem>>, vector<1x1x128xf32>
    %56 = vector.shape_cast %55 : vector<1x1x128xf32> to vector<1x128xf32>
    %57 = vector.broadcast %56 : vector<1x128xf32> to vector<128x128xf32>
    %58 = arith.addf %54, %57 : vector<128x128xf32>
    %cst_42 = arith.constant 0.000000e+00 : f32
    %59 = vector.broadcast %cst_42 : f32 to vector<128x128xf32>
    %60 = arith.maximumf %58, %59 : vector<128x128xf32>
    %c0_43 = arith.constant 0 : index
    %c0_44 = arith.constant 0 : index
    %61 = vector.load %arg4[%c0_43, %c0_44] : memref<128x128xf32, #tpu.memory_space<vmem>>, vector<128x128xf32>
    tpu.vector_store %arg4[%c0_43, %c0_44], %60 {strides = array<i32>} : memref<128x128xf32, #tpu.memory_space<vmem>>, vector<128x128xf32>,
    return
  }
  func.func @transform_0(%arg0: i32) -> (i32, i32) {
    %c0_i32 = arith.constant 0 : i32
    %c0_i32_0 = arith.constant 0 : i32
    return %arg0, %c0_i32 : i32, i32
  }
  func.func @transform_1(%arg0: i32) -> (i32, i32, i32) {
    %c0_i32 = arith.constant 0 : i32
    %c0_i32_0 = arith.constant 0 : i32
    %c0_i32_1 = arith.constant 0 : i32
    %c0_i32_2 = arith.constant 0 : i32
    return %c0_i32, %c0_i32_0, %c0_i32_1 : i32, i32, i32
  }
  func.func @transform_2(%arg0: i32) -> (i32, i32, i32) {
    %c0_i32 = arith.constant 0 : i32
    %c0_i32_0 = arith.constant 0 : i32
    %c0_i32_1 = arith.constant 0 : i32
    %c0_i32_2 = arith.constant 0 : i32
    return %c0_i32, %c0_i32_0, %c0_i32_1 : i32, i32, i32
  }
  func.func @transform_3(%arg0: i32) -> (i32, i32) {
    %c0_i32 = arith.constant 0 : i32
    %c0_i32_0 = arith.constant 0 : i32
    return %arg0, %c0_i32 : i32, i32
  }
}

</mosaic_0001>

<llo_original>
// kernel: tpu_custom_call.1
$region0: #{tpu_custom_call.1}
  #allocation0 [shape = 'u32[]', space=smem, size = 0x4, offset = 0x4, fixed_abs, tag = 'smem constant byte address 0x4 - core index']
  #allocation1 [shape = 'u32[144,128]{1,0:T(1,128)}', space=vmem, size = 0x12000, scoped, tag = 'internal scratch']
  %s0 = inlined_call_operand.vmem [shape: f32[256,64], index: 0, kind: input, shape index: {}]
  %s1 = inlined_call_operand.vmem [shape: bf16[6,128,128], index: 1, kind: input, shape index: {}]
  %s2 = inlined_call_operand.vmem [shape: f32[6,1,128], index: 2, kind: input, shape index: {}]
  %s3 = inlined_call_operand.hbm [shape: f32[256,128], index: 3, kind: output, shape index: {}]
  %s4 = sld [smem:[#allocation0]]
  $region45: #{tpu_custom_call.1} parent=0
    _
  %s6 = ssub.s32 1, %s4
  %s7 = scalar_select 0, %s6, %s4
  $region1: #{tpu_custom_call.1} parent=0
    #allocation2 [shape = 'u8[131072]{0}', space=vmem, size = 0x20000, scoped, tag = 'output window, operand 0']
    #allocation3 [shape = 's32[2]{0}', space=sflag, size = 0x8, scoped, tag = 'scoped memory for tpu_custom_call.1']
    %8 = vsyncpa [#allocation3], 0
    %s9 = scalar_lea.sflag [#allocation3], 1
    %10 = vsyncpa %s9, 0
    loop: start=0, step=1, limit=4
    $region2: #{tpu_custom_call.1} parent=1 // loop_pre_header
      _
    $region3: #{tpu_custom_call.1} parent=1 // loop_header
      %s12 = sphi 0, %s16
      %p13 = scmp.ge.s32.totalorder %s12, 4
      %s22 = sphi 0, %s24
      %s25 = sphi 0, %s22
      %s26 = sphi 0, %s25
      %s42 = sphi 0, %s26
      %s46 = sphi 0, %s46
      %s48 = sphi 0, %s46
      %s49 = sphi 0, %s48
      %s63 = sphi 0, %s49
      %s67 = sphi 0, %s67
      %s69 = sphi 0, %s67
      %s70 = sphi 0, %s69
      %s84 = sphi 0, %s70
      %s90 = sphi 0, %s92
      %s93 = sphi 0, %s90
      %s94 = sphi 0, %s93
      %s110 = sphi 0, %s94
    $region4: #{tpu_custom_call.1} parent=1 // loop_header_branch
      %15 = sbr.rel (%p13) target = $region8
    $region5: #{tpu_custom_call.1} parent=1 // loop_body
      %s17 = ssub.s32 %s12, 1
      %s18 = ssub.s32 %s12, 2
      %s19 = sadd.s32 %s12, 1
      %s20 = ssub.s32 %s12, %s19
      %p21 = scmp.eq.s32.totalorder %s20, 0
      %s23 = sadd.s32 %s22, 1
      %s24 = scalar_select %p21, %s22, %s23
      %p27 = pneg %p21
      %p28 = scmp.eq.s32.totalorder %s12, 1
      %p29 = por %p27, %p28
      %p30 = scmp.ne.s32.totalorder %s22, %s25
      %p31 = scmp.eq.s32.totalorder %s12, 0
      %p32 = por %p30, %p31
      %p33 = scmp.ne.s32.totalorder %s22, %s25
      %p34 = scmp.eq.s32.totalorder %s17, 1
      %p35 = por %p33, %p34
      %p36 = scmp.ne.s32.totalorder %s25, %s26
      %p37 = scmp.eq.s32.totalorder %s17, 0
      %p38 = por %p36, %p37
      %p39 = scmp.ne.s32.totalorder %s25, %s26
      %p40 = scmp.eq.s32.totalorder %s18, 1
      %p41 = por %p39, %p40
      %p43 = scmp.ne.s32.totalorder %s26, %s42
      %p44 = scmp.eq.s32.totalorder %s18, 0
      %p45 = por %p43, %p44
      %s47 = sadd.s32 %s46, 1
      %p50 = scmp.eq.s32.totalorder %s12, 1
      %p51 = scmp.ne.s32.totalorder %s46, %s48
      %p52 = scmp.eq.s32.totalorder %s12, 0
      %p53 = por %p51, %p52
      %p54 = scmp.ne.s32.totalorder %s46, %s48
      %p55 = scmp.eq.s32.totalorder %s17, 1
      %p56 = por %p54, %p55
      %p57 = scmp.ne.s32.totalorder %s48, %s49
      %p58 = scmp.eq.s32.totalorder %s17, 0
      %p59 = por %p57, %p58
      %p60 = scmp.ne.s32.totalorder %s48, %s49
      %p61 = scmp.eq.s32.totalorder %s18, 1
      %p62 = por %p60, %p61
      %p64 = scmp.ne.s32.totalorder %s49, %s63
      %p65 = scmp.eq.s32.totalorder %s18, 0
      %p66 = por %p64, %p65
      %s68 = sadd.s32 %s67, 1
      %p71 = scmp.eq.s32.totalorder %s12, 1
      %p72 = scmp.ne.s32.totalorder %s67, %s69
      %p73 = scmp.eq.s32.totalorder %s12, 0
      %p74 = por %p72, %p73
      %p75 = scmp.ne.s32.totalorder %s67, %s69
      %p76 = scmp.eq.s32.totalorder %s17, 1
      %p77 = por %p75, %p76
      %p78 = scmp.ne.s32.totalorder %s69, %s70
      %p79 = scmp.eq.s32.totalorder %s17, 0
      %p80 = por %p78, %p79
      %p81 = scmp.ne.s32.totalorder %s69, %s70
      %p82 = scmp.eq.s32.totalorder %s18, 1
      %p83 = por %p81, %p82
      %p85 = scmp.ne.s32.totalorder %s70, %s84
      %p86 = scmp.eq.s32.totalorder %s18, 0
      %p87 = por %p85, %p86
      %s88 = ssub.s32 %s12, %s19
      %p89 = scmp.eq.s32.totalorder %s88, 0
      %s91 = sadd.s32 %s90, 1
      %s92 = scalar_select %p89, %s90, %s91
      %p95 = pneg %p89
      %p96 = scmp.eq.s32.totalorder %s12, 1
      %p97 = por %p95, %p96
      %p98 = scmp.ne.s32.totalorder %s90, %s93
      %p99 = scmp.eq.s32.totalorder %s12, 0
      %p100 = por %p98, %p99
      %p101 = scmp.ne.s32.totalorder %s90, %s93
      %p102 = scmp.eq.s32.totalorder %s17, 1
      %p103 = por %p101, %p102
      %p104 = scmp.ne.s32.totalorder %s93, %s94
      %p105 = scmp.eq.s32.totalorder %s17, 0
      %p106 = por %p104, %p105
      %p107 = scmp.ne.s32.totalorder %s93, %s94
      %p108 = scmp.eq.s32.totalorder %s18, 1
      %p109 = por %p107, %p108
      %p111 = scmp.ne.s32.totalorder %s94, %s110
      %p112 = scmp.eq.s32.totalorder %s18, 0
      %p113 = por %p111, %p112
      %p114 = scmp.le.s32.totalorder 1, %s12
      %p115 = scmp.lt.s32.totalorder %s12, 3
      %p116 = pnand %p114, %p115
      %p117 = pneg %p116
      // Predicated region
      $region9: #{tpu_custom_call.1} parent=5 // pred_check
        _
      $region10: #{tpu_custom_call.1} parent=5 // pred_check_branch
        %119 = sbr.rel (%p116) target = $region12
      $region11: #{tpu_custom_call.1} parent=5 // pred_region
        %s120 = ssub.s32 %s12, 1
        // Predicated region
        $region13: #{tpu_custom_call.1} parent=11 // pred_check
          %p121 = pneg %p59
        $region14: #{tpu_custom_call.1} parent=11 // pred_check_branch
          %123 = sbr.rel (%p121) target = $region16
        $region15: #{tpu_custom_call.1} parent=11 // pred_region
          _
        $region16: #{tpu_custom_call.1} parent=11 // pred_fallthru
          _
        // Predicated region
        $region17: #{tpu_custom_call.1} parent=11 // pred_check
          %p124 = pneg %p80
        $region18: #{tpu_custom_call.1} parent=11 // pred_check_branch
          %126 = sbr.rel (%p124) target = $region20
        $region19: #{tpu_custom_call.1} parent=11 // pred_region
          _
        $region20: #{tpu_custom_call.1} parent=11 // pred_fallthru
          _
      $region12: #{tpu_custom_call.1} parent=5 // pred_fallthru
        _
      %p127 = scmp.lt.s32.totalorder %s12, 2
      // Predicated region
      $region21: #{tpu_custom_call.1} parent=5 // pred_check
        %p128 = pneg %p127
      $region22: #{tpu_custom_call.1} parent=5 // pred_check_branch
        %130 = sbr.rel (%p128) target = $region24
      $region23: #{tpu_custom_call.1} parent=5 // pred_region
        // Predicated region
        $region25: #{tpu_custom_call.1} parent=23 // pred_check
          %p131 = pneg %p32
        $region26: #{tpu_custom_call.1} parent=23 // pred_check_branch
          %133 = sbr.rel (%p131) target = $region28
        $region27: #{tpu_custom_call.1} parent=23 // pred_region
          %s134 = smul.u32 16, %s12
          %p135 = scmp.lt.s32.totalorder %s134, 31
          %s136 = scalar_select %p135, %s134, 31
          %s137 = smul.addr %s136, 8
          %s138 = scalar_lea.vmem %s0, %s137
          %s139 = smul.u32 16, %s12
        $region28: #{tpu_custom_call.1} parent=23 // pred_fallthru
          _
      $region24: #{tpu_custom_call.1} parent=5 // pred_fallthru
        _
      %p140 = scmp.le.s32.totalorder 1, %s12
      %p141 = scmp.lt.s32.totalorder %s12, 3
      %p142 = pnand %p140, %p141
      %p143 = pneg %p142
      // Predicated region
      $region29: #{tpu_custom_call.1} parent=5 // pred_check
        _
      $region30: #{tpu_custom_call.1} parent=5 // pred_check_branch
        %145 = sbr.rel (%p142) target = $region32
      $region31: #{tpu_custom_call.1} parent=5 // pred_region
        %s146 = ssub.s32 %s12, 1
        %s147 = smul.u32 16, %s17
        %p148 = scmp.lt.s32.totalorder %s147, 31
        %s149 = scalar_select %p148, %s147, 31
        %s150 = smul.addr %s149, 8
        %s151 = scalar_lea.vmem %s0, %s150
        %p152 = pneg %p38
        %p153 = pneg %p35
        %p154 = pneg %p59
        %p155 = pneg %p56
        %p156 = pneg %p80
        %p157 = pneg %p77
        %p158 = pneg %p106
        %p159 = pneg %p103
        %s160 = sand.u32 %s93, 1
        %s161 = scalar_lea.sflag [#allocation3], %s160
        %s162 = sand.u32 %s93, 1
        %s163 = smul.addr %s162, 128
        %s164 = scalar_lea.vmem [#allocation2], %s163
        %s165 = smul.u32 16, %s17
        %p166 = scmp.lt.s32.totalorder %s165, 31
        %s167 = scalar_select %p166, %s165, 31
        %s168 = smul.addr %s167, 8
        %s169 = scalar_lea.vmem %s0, %s168
        %s170 = smul.u32 16, %s17
        %s171 = smul.u32 16, %s17
        %v173 = vld [vmem:[%s169] sm:$0xff]
        %v174 = vld [vmem:[%s169 + $0x8] sm:$0xff]
        %v175 = vld [vmem:[%s169 + $0x10] sm:$0xff]
        %v176 = vld [vmem:[%s169 + $0x18] sm:$0xff]
        %v177 = vld [vmem:[%s169 + $0x20] sm:$0xff]
        %v178 = vld [vmem:[%s169 + $0x28] sm:$0xff]
        %v179 = vld [vmem:[%s169 + $0x30] sm:$0xff]
        %v180 = vld [vmem:[%s169 + $0x38] sm:$0xff]
        %v181 = vld [vmem:[%s169 + $0x40] sm:$0xff]
        %v182 = vld [vmem:[%s169 + $0x48] sm:$0xff]
        %v183 = vld [vmem:[%s169 + $0x50] sm:$0xff]
        %v184 = vld [vmem:[%s169 + $0x58] sm:$0xff]
        %v185 = vld [vmem:[%s169 + $0x60] sm:$0xff]
        %v186 = vld [vmem:[%s169 + $0x68] sm:$0xff]
        %v187 = vld [vmem:[%s169 + $0x70] sm:$0xff]
        %v188 = vld [vmem:[%s169 + $0x78] sm:$0xff]
        %v189 = vpack.c.bf16 %v174, %v173
        %v190 = vpack.c.bf16 %v176, %v175
        %v191 = vpack.c.bf16 %v178, %v177
        %v192 = vpack.c.bf16 %v180, %v179
        %v193 = vpack.c.bf16 %v182, %v181
        %v194 = vpack.c.bf16 %v184, %v183
        %v195 = vpack.c.bf16 %v186, %v185
        %v196 = vpack.c.bf16 %v188, %v187
        %v197 = vld [vmem:[%s1] sm:$0xf]
        %v198 = vld [vmem:[%s1 + $0x4] sm:$0xf]
        %v199 = vld [vmem:[%s1 + $0x8] sm:$0xf]
        %v200 = vld [vmem:[%s1 + $0xc] sm:$0xf]
        %v201 = vld [vmem:[%s1 + $0x10] sm:$0xf]
        %v202 = vld [vmem:[%s1 + $0x14] sm:$0xf]
        %v203 = vld [vmem:[%s1 + $0x18] sm:$0xf]
        %v204 = vld [vmem:[%s1 + $0x1c] sm:$0xf]
        %v205 = vld [vmem:[%s2] sm:$0x1]
        %v207 = vlaneseq
        %v208 = vshrl.u32 %v207, 7
        %v209 = vsub.s32 0, %v208
        %v210 = vrot.slane %v205, %v209
        %v220 = vunpack.c.l.b16 %v197
        %v221 = vunpack.c.l.b16 %v198
        %v222 = vunpack.c.l.b16 %v199
        %v223 = vunpack.c.l.b16 %v200
        %v224 = vunpack.c.l.b16 %v201
        %v225 = vunpack.c.l.b16 %v202
        %v226 = vunpack.c.l.b16 %v203
        %v227 = vunpack.c.l.b16 %v204
        %v228 = vpack.c.b16 %v221, %v220
        %v229 = vpack.c.b16 %v223, %v222
        %v230 = vpack.c.b16 %v225, %v224
        %v231 = vpack.c.b16 %v227, %v226
        %vm236 = vcmask 523264
        %v238 = vsel %vm236, %v189, 0
        %v241 = vsel %vm236, %v190, 0
        %v244 = vsel %vm236, %v191, 0
        %v247 = vsel %vm236, %v192, 0
        %v250 = vsel %vm236, %v193, 0
        %v253 = vsel %vm236, %v194, 0
        %v256 = vsel %vm236, %v195, 0
        %v259 = vsel %vm236, %v196, 0
        %261 = vmatprep.subr.bf16.mxu0 0
        %262 = vmatpush1.bf16.msra.mxu0 %v228
        %263 = vmatprep.subr.bf16.mxu0 0
        %264 = vmatpush1.bf16.msra.mxu0 %v229
        %265 = vmatprep.subr.bf16.mxu0 0
        %266 = vmatpush1.bf16.msra.mxu0 %v230
        %267 = vmatprep.subr.bf16.mxu0 0
        %268 = vmatpush1.bf16.msra.mxu0 %v231
        %269 = vmatprep.subr.bf16.mxu0 0
        %270 = vmatpush1.bf16.msra.mxu0 0
        %271 = vmatprep.subr.bf16.mxu0 0
        %272 = vmatpush1.bf16.msra.mxu0 0
        %273 = vmatprep.subr.bf16.mxu0 0
        %274 = vmatpush1.bf16.msra.mxu0 0
        %275 = vmatprep.subr.bf16.mxu0 0
        %276 = vmatpush1.bf16.msra.mxu0 0
        %277 = vmatprep.subr.bf16.mxu0 0
        %278 = vmatpush1.bf16.msra.mxu0 0
        %279 = vmatprep.subr.bf16.mxu0 0
        %280 = vmatpush1.bf16.msra.mxu0 0
        %281 = vmatprep.subr.bf16.mxu0 0
        %282 = vmatpush1.bf16.msra.mxu0 0
        %283 = vmatprep.subr.bf16.mxu0 0
        %284 = vmatpush1.bf16.msra.mxu0 0
        %285 = vmatprep.subr.bf16.mxu0 0
        %286 = vmatpush1.bf16.msra.mxu0 0
        %287 = vmatprep.subr.bf16.mxu0 0
        %288 = vmatpush1.bf16.msra.mxu0 0
        %289 = vmatprep.subr.bf16.mxu0 0
        %290 = vmatpush1.bf16.msra.mxu0 0
        %291 = vmatprep.subr.bf16.mxu0 0
        %292 = vmatpush1.bf16.msra.mxu0 0
        %293 = vmatprep.mubr.bf16.mxu0 0
        %294 = vmatmul.mubr.bf16.gmra.mrb[0].mxu0 %v238
        %v295 = vpop.f32.mrb[0].mxu0
        %v296 = vadd.f32 %v210, %v295
        %v297 = vpop.f32.mrb[0].mxu0
        %v298 = vpop.f32.mrb[0].mxu0
        %v299 = vadd.f32 %v210, %v298
        %v300 = vpop.f32.mrb[0].mxu0
        %301 = vmatprep.mubr.bf16.mxu0 0
        %302 = vmatmul.mubr.bf16.gmra.mrb[0].mxu0 %v241
        %v303 = vpop.f32.mrb[0].mxu0
        %v304 = vadd.f32 %v210, %v303
        %v305 = vpop.f32.mrb[0].mxu0
        %v306 = vpop.f32.mrb[0].mxu0
        %v307 = vadd.f32 %v210, %v306
        %v308 = vpop.f32.mrb[0].mxu0
        %309 = vmatprep.mubr.bf16.mxu0 0
        %310 = vmatmul.mubr.bf16.gmra.mrb[0].mxu0 %v244
        %v311 = vpop.f32.mrb[0].mxu0
        %v312 = vadd.f32 %v210, %v311
        %v313 = vpop.f32.mrb[0].mxu0
        %v314 = vpop.f32.mrb[0].mxu0
        %v315 = vadd.f32 %v210, %v314
        %v316 = vpop.f32.mrb[0].mxu0
        %317 = vmatprep.mubr.bf16.mxu0 0
        %318 = vmatmul.mubr.bf16.gmra.mrb[0].mxu0 %v247
        %v319 = vpop.f32.mrb[0].mxu0
        %v320 = vadd.f32 %v210, %v319
        %v321 = vpop.f32.mrb[0].mxu0
        %v322 = vpop.f32.mrb[0].mxu0
        %v323 = vadd.f32 %v210, %v322
        %v324 = vpop.f32.mrb[0].mxu0
        %325 = vmatprep.mubr.bf16.mxu0 0
        %326 = vmatmul.mubr.bf16.gmra.mrb[0].mxu0 %v250
        %v327 = vpop.f32.mrb[0].mxu0
        %v328 = vadd.f32 %v210, %v327
        %v329 = vpop.f32.mrb[0].mxu0
        %v330 = vpop.f32.mrb[0].mxu0
        %v331 = vadd.f32 %v210, %v330
        %v332 = vpop.f32.mrb[0].mxu0
        %333 = vmatprep.mubr.bf16.mxu0 0
        %334 = vmatmul.mubr.bf16.gmra.mrb[0].mxu0 %v253
        %v335 = vpop.f32.mrb[0].mxu0
        %v336 = vadd.f32 %v210, %v335
        %v337 = vpop.f32.mrb[0].mxu0
        %v338 = vpop.f32.mrb[0].mxu0
        %v339 = vadd.f32 %v210, %v338
        %v340 = vpop.f32.mrb[0].mxu0
        %341 = vmatprep.mubr.bf16.mxu0 0
        %342 = vmatmul.mubr.bf16.gmra.mrb[0].mxu0 %v256
        %v343 = vpop.f32.mrb[0].mxu0
        %v344 = vadd.f32 %v210, %v343
        %v345 = vpop.f32.mrb[0].mxu0
        %v346 = vpop.f32.mrb[0].mxu0
        %v347 = vadd.f32 %v210, %v346
        %v348 = vpop.f32.mrb[0].mxu0
        %349 = vmatprep.mubr.bf16.mxu0 0
        %350 = vmatmul.mubr.bf16.gmra.mrb[0].mxu0 %v259
        %v351 = vpop.f32.mrb[0].mxu0
        %v352 = vadd.f32 %v210, %v351
        %v353 = vpop.f32.mrb[0].mxu0
        %v354 = vpop.f32.mrb[0].mxu0
        %v355 = vadd.f32 %v210, %v354
        %v356 = vpop.f32.mrb[0].mxu0
        %357 = vdwg.mxu0
        %v358 = vmax.f32 %v296, 0.0
        %v359 = vmax.f32 %v299, 0.0
        %v360 = vmax.f32 %v304, 0.0
        %v361 = vmax.f32 %v307, 0.0
        %v362 = vmax.f32 %v312, 0.0
        %v363 = vmax.f32 %v315, 0.0
        %v364 = vmax.f32 %v320, 0.0
        %v365 = vmax.f32 %v323, 0.0
        %v366 = vmax.f32 %v328, 0.0
        %v367 = vmax.f32 %v331, 0.0
        %v368 = vmax.f32 %v336, 0.0
        %v369 = vmax.f32 %v339, 0.0
        %v370 = vmax.f32 %v344, 0.0
        %v371 = vmax.f32 %v347, 0.0
        %v372 = vmax.f32 %v352, 0.0
        %v373 = vmax.f32 %v355, 0.0
        %v374 = vpack.c.bf16 %v359, %v358
        %v375 = vpack.c.bf16 %v361, %v360
        %v376 = vpack.c.bf16 %v363, %v362
        %v377 = vpack.c.bf16 %v365, %v364
        %v378 = vpack.c.bf16 %v367, %v366
        %v379 = vpack.c.bf16 %v369, %v368
        %v380 = vpack.c.bf16 %v371, %v370
        %v381 = vpack.c.bf16 %v373, %v372
        %s382 = scalar_lea.vmem %s1, 64
        %v383 = vld [vmem:[%s382] sm:$0xf]
        %v384 = vld [vmem:[%s382 + $0x4] sm:$0xf]
        %v385 = vld [vmem:[%s382 + $0x8] sm:$0xf]
        %v386 = vld [vmem:[%s382 + $0xc] sm:$0xf]
        %v387 = vld [vmem:[%s382 + $0x10] sm:$0xf]
        %v388 = vld [vmem:[%s382 + $0x14] sm:$0xf]
        %v389 = vld [vmem:[%s382 + $0x18] sm:$0xf]
        %v390 = vld [vmem:[%s382 + $0x1c] sm:$0xf]
        %v391 = vld [vmem:[%s382 + $0x20] sm:$0xf]
        %v392 = vld [vmem:[%s382 + $0x24] sm:$0xf]
        %v393 = vld [vmem:[%s382 + $0x28] sm:$0xf]
        %v394 = vld [vmem:[%s382 + $0x2c] sm:$0xf]
        %v395 = vld [vmem:[%s382 + $0x30] sm:$0xf]
        %v396 = vld [vmem:[%s382 + $0x34] sm:$0xf]
        %v397 = vld [vmem:[%s382 + $0x38] sm:$0xf]
        %v398 = vld [vmem:[%s382 + $0x3c] sm:$0xf]
        %s399 = scalar_lea.vmem %s2, 1
        %v400 = vld [vmem:[%s399] sm:$0x1]
        %v402 = vlaneseq
        %v403 = vshrl.u32 %v402, 7
        %v404 = vsub.s32 0, %v403
        %v405 = vrot.slane %v400, %v404
        %v423 = vunpack.c.l.b16 %v383
        %v424 = vunpack.c.l.b16 %v384
        %v425 = vunpack.c.l.b16 %v385
        %v426 = vunpack.c.l.b16 %v386
        %v427 = vunpack.c.l.b16 %v387
        %v428 = vunpack.c.l.b16 %v388
        %v429 = vunpack.c.l.b16 %v389
        %v430 = vunpack.c.l.b16 %v390
        %v431 = vunpack.c.l.b16 %v391
        %v432 = vunpack.c.l.b16 %v392
        %v433 = vunpack.c.l.b16 %v393
        %v434 = vunpack.c.l.b16 %v394
        %v435 = vunpack.c.l.b16 %v395
        %v436 = vunpack.c.l.b16 %v396
        %v437 = vunpack.c.l.b16 %v397
        %v438 = vunpack.c.l.b16 %v398
        %v439 = vpack.c.b16 %v424, %v423
        %v440 = vpack.c.b16 %v426, %v425
        %v441 = vpack.c.b16 %v428, %v427
        %v442 = vpack.c.b16 %v430, %v429
        %v443 = vpack.c.b16 %v432, %v431
        %v444 = vpack.c.b16 %v434, %v433
        %v445 = vpack.c.b16 %v436, %v435
        %v446 = vpack.c.b16 %v438, %v437
        %455 = vmatprep.subr.bf16.mxu0 0
        %456 = vmatpush1.bf16.msra.mxu0 %v439
        %457 = vmatprep.subr.bf16.mxu0 0
        %458 = vmatpush1.bf16.msra.mxu0 %v440
        %459 = vmatprep.subr.bf16.mxu0 0
        %460 = vmatpush1.bf16.msra.mxu0 %v441
        %461 = vmatprep.subr.bf16.mxu0 0
        %462 = vmatpush1.bf16.msra.mxu0 %v442
        %463 = vmatprep.subr.bf16.mxu0 0
        %464 = vmatpush1.bf16.msra.mxu0 %v443
        %465 = vmatprep.subr.bf16.mxu0 0
        %466 = vmatpush1.bf16.msra.mxu0 %v444
        %467 = vmatprep.subr.bf16.mxu0 0
        %468 = vmatpush1.bf16.msra.mxu0 %v445
        %469 = vmatprep.subr.bf16.mxu0 0
        %470 = vmatpush1.bf16.msra.mxu0 %v446
        %471 = vmatprep.subr.bf16.mxu0 0
        %472 = vmatpush1.bf16.msra.mxu0 0
        %473 = vmatprep.subr.bf16.mxu0 0
        %474 = vmatpush1.bf16.msra.mxu0 0
        %475 = vmatprep.subr.bf16.mxu0 0
        %476 = vmatpush1.bf16.msra.mxu0 0
        %477 = vmatprep.subr.bf16.mxu0 0
        %478 = vmatpush1.bf16.msra.mxu0 0
        %479 = vmatprep.subr.bf16.mxu0 0
        %480 = vmatpush1.bf16.msra.mxu0 0
        %481 = vmatprep.subr.bf16.mxu0 0
        %482 = vmatpush1.bf16.msra.mxu0 0
        %483 = vmatprep.subr.bf16.mxu0 0
        %484 = vmatpush1.bf16.msra.mxu0 0
        %485 = vmatprep.subr.bf16.mxu0 0
        %486 = vmatpush1.bf16.msra.mxu0 0
        %487 = vmatprep.mubr.bf16.mxu0 0
        %488 = vmatmul.mubr.bf16.gmra.mrb[0].mxu0 %v374
        %v489 = vpop.f32.mrb[0].mxu0
        %v490 = vadd.f32 %v405, %v489
        %v491 = vpop.f32.mrb[0].mxu0
        %v492 = vpop.f32.mrb[0].mxu0
        %v493 = vadd.f32 %v405, %v492
        %v494 = vpop.f32.mrb[0].mxu0
        %495 = vmatprep.mubr.bf16.mxu0 0
        %496 = vmatmul.mubr.bf16.gmra.mrb[0].mxu0 %v375
        %v497 = vpop.f32.mrb[0].mxu0
        %v498 = vadd.f32 %v405, %v497
        %v499 = vpop.f32.mrb[0].mxu0
        %v500 = vpop.f32.mrb[0].mxu0
        %v501 = vadd.f32 %v405, %v500
        %v502 = vpop.f32.mrb[0].mxu0
        %503 = vmatprep.mubr.bf16.mxu0 0
        %504 = vmatmul.mubr.bf16.gmra.mrb[0].mxu0 %v376
        %v505 = vpop.f32.mrb[0].mxu0
        %v506 = vadd.f32 %v405, %v505
        %v507 = vpop.f32.mrb[0].mxu0
        %v508 = vpop.f32.mrb[0].mxu0
        %v509 = vadd.f32 %v405, %v508
        %v510 = vpop.f32.mrb[0].mxu0
        %511 = vmatprep.mubr.bf16.mxu0 0
        %512 = vmatmul.mubr.bf16.gmra.mrb[0].mxu0 %v377
        %v513 = vpop.f32.mrb[0].mxu0
        %v514 = vadd.f32 %v405, %v513
        %v515 = vpop.f32.mrb[0].mxu0
        %v516 = vpop.f32.mrb[0].mxu0
        %v517 = vadd.f32 %v405, %v516
        %v518 = vpop.f32.mrb[0].mxu0
        %519 = vmatprep.mubr.bf16.mxu0 0
        %520 = vmatmul.mubr.bf16.gmra.mrb[0].mxu0 %v378
        %v521 = vpop.f32.mrb[0].mxu0
        %v522 = vadd.f32 %v405, %v521
        %v523 = vpop.f32.mrb[0].mxu0
        %v524 = vpop.f32.mrb[0].mxu0
        %v525 = vadd.f32 %v405, %v524
        %v526 = vpop.f32.mrb[0].mxu0
        %527 = vmatprep.mubr.bf16.mxu0 0
        %528 = vmatmul.mubr.bf16.gmra.mrb[0].mxu0 %v379
        %v529 = vpop.f32.mrb[0].mxu0
        %v530 = vadd.f32 %v405, %v529
        %v531 = vpop.f32.mrb[0].mxu0
        %v532 = vpop.f32.mrb[0].mxu0
        %v533 = vadd.f32 %v405, %v532
        %v534 = vpop.f32.mrb[0].mxu0
        %535 = vmatprep.mubr.bf16.mxu0 0
        %536 = vmatmul.mubr.bf16.gmra.mrb[0].mxu0 %v380
        %v537 = vpop.f32.mrb[0].mxu0
        %v538 = vadd.f32 %v405, %v537
        %v539 = vpop.f32.mrb[0].mxu0
        %v540 = vpop.f32.mrb[0].mxu0
        %v541 = vadd.f32 %v405, %v540
        %v542 = vpop.f32.mrb[0].mxu0
        %543 = vmatprep.mubr.bf16.mxu0 0
        %544 = vmatmul.mubr.bf16.gmra.mrb[0].mxu0 %v381
        %v545 = vpop.f32.mrb[0].mxu0
        %v546 = vadd.f32 %v405, %v545
        %v547 = vpop.f32.mrb[0].mxu0
        %v548 = vpop.f32.mrb[0].mxu0
        %v549 = vadd.f32 %v405, %v548
        %v550 = vpop.f32.mrb[0].mxu0
        %551 = vdwg.mxu0
        %v552 = vmax.f32 %v490, 0.0
        %v553 = vmax.f32 %v493, 0.0
        %v554 = vmax.f32 %v498, 0.0
        %v555 = vmax.f32 %v501, 0.0
        %v556 = vmax.f32 %v506, 0.0
        %v557 = vmax.f32 %v509, 0.0
        %v558 = vmax.f32 %v514, 0.0
        %v559 = vmax.f32 %v517, 0.0
        %v560 = vmax.f32 %v522, 0.0
        %v561 = vmax.f32 %v525, 0.0
        %v562 = vmax.f32 %v530, 0.0
        %v563 = vmax.f32 %v533, 0.0
        %v564 = vmax.f32 %v538, 0.0
        %v565 = vmax.f32 %v541, 0.0
        %v566 = vmax.f32 %v546, 0.0
        %v567 = vmax.f32 %v549, 0.0
        %v568 = vpack.c.bf16 %v553, %v552
        %v569 = vpack.c.bf16 %v555, %v554
        %v570 = vpack.c.bf16 %v557, %v556
        %v571 = vpack.c.bf16 %v559, %v558
        %v572 = vpack.c.bf16 %v561, %v560
        %v573 = vpack.c.bf16 %v563, %v562
        %v574 = vpack.c.bf16 %v565, %v564
        %v575 = vpack.c.bf16 %v567, %v566
        %s576 = scalar_lea.vmem %s1, 128
        %v577 = vld [vmem:[%s576] sm:$0xf]
        %v578 = vld [vmem:[%s576 + $0x4] sm:$0xf]
        %v579 = vld [vmem:[%s576 + $0x8] sm:$0xf]
        %v580 = vld [vmem:[%s576 + $0xc] sm:$0xf]
        %v581 = vld [vmem:[%s576 + $0x10] sm:$0xf]
        %v582 = vld [vmem:[%s576 + $0x14] sm:$0xf]
        %v583 = vld [vmem:[%s576 + $0x18] sm:$0xf]
        %v584 = vld [vmem:[%s576 + $0x1c] sm:$0xf]
        %v585 = vld [vmem:[%s576 + $0x20] sm:$0xf]
        %v586 = vld [vmem:[%s576 + $0x24] sm:$0xf]
        %v587 = vld [vmem:[%s576 + $0x28] sm:$0xf]
        %v588 = vld [vmem:[%s576 + $0x2c] sm:$0xf]
        %v589 = vld [vmem:[%s576 + $0x30] sm:$0xf]
        %v590 = vld [vmem:[%s576 + $0x34] sm:$0xf]
        %v591 = vld [vmem:[%s576 + $0x38] sm:$0xf]
        %v592 = vld [vmem:[%s576 + $0x3c] sm:$0xf]
        %s593 = scalar_lea.vmem %s2, 2
        %v594 = vld [vmem:[%s593] sm:$0x1]
        %v596 = vlaneseq
        %v597 = vshrl.u32 %v596, 7
        %v598 = vsub.s32 0, %v597
        %v599 = vrot.slane %v594, %v598
        %v617 = vunpack.c.l.b16 %v577
        %v618 = vunpack.c.l.b16 %v578
        %v619 = vunpack.c.l.b16 %v579
        %v620 = vunpack.c.l.b16 %v580
        %v621 = vunpack.c.l.b16 %v581
        %v622 = vunpack.c.l.b16 %v582
        %v623 = vunpack.c.l.b16 %v583
        %v624 = vunpack.c.l.b16 %v584
        %v625 = vunpack.c.l.b16 %v585
        %v626 = vunpack.c.l.b16 %v586
        %v627 = vunpack.c.l.b16 %v587
        %v628 = vunpack.c.l.b16 %v588
        %v629 = vunpack.c.l.b16 %v589
        %v630 = vunpack.c.l.b16 %v590
        %v631 = vunpack.c.l.b16 %v591
        %v632 = vunpack.c.l.b16 %v592
        %v633 = vpack.c.b16 %v618, %v617
        %v634 = vpack.c.b16 %v620, %v619
        %v635 = vpack.c.b16 %v622, %v621
        %v636 = vpack.c.b16 %v624, %v623
        %v637 = vpack.c.b16 %v626, %v625
        %v638 = vpack.c.b16 %v628, %v627
        %v639 = vpack.c.b16 %v630, %v629
        %v640 = vpack.c.b16 %v632, %v631
        %649 = vmatprep.subr.bf16.mxu0 0
        %650 = vmatpush1.bf16.msra.mxu0 %v633
        %651 = vmatprep.subr.bf16.mxu0 0
        %652 = vmatpush1.bf16.msra.mxu0 %v634
        %653 = vmatprep.subr.bf16.mxu0 0
        %654 = vmatpush1.bf16.msra.mxu0 %v635
        %655 = vmatprep.subr.bf16.mxu0 0
        %656 = vmatpush1.bf16.msra.mxu0 %v636
        %657 = vmatprep.subr.bf16.mxu0 0
        %658 = vmatpush1.bf16.msra.mxu0 %v637
        %659 = vmatprep.subr.bf16.mxu0 0
        %660 = vmatpush1.bf16.msra.mxu0 %v638
        %661 = vmatprep.subr.bf16.mxu0 0
        %662 = vmatpush1.bf16.msra.mxu0 %v639
        %663 = vmatprep.subr.bf16.mxu0 0
        %664 = vmatpush1.bf16.msra.mxu0 %v640
        %665 = vmatprep.subr.bf16.mxu0 0
        %666 = vmatpush1.bf16.msra.mxu0 0
        %667 = vmatprep.subr.bf16.mxu0 0
        %668 = vmatpush1.bf16.msra.mxu0 0
        %669 = vmatprep.subr.bf16.mxu0 0
        %670 = vmatpush1.bf16.msra.mxu0 0
        %671 = vmatprep.subr.bf16.mxu0 0
        %672 = vmatpush1.bf16.msra.mxu0 0
        %673 = vmatprep.subr.bf16.mxu0 0
        %674 = vmatpush1.bf16.msra.mxu0 0
        %675 = vmatprep.subr.bf16.mxu0 0
        %676 = vmatpush1.bf16.msra.mxu0 0
        %677 = vmatprep.subr.bf16.mxu0 0
        %678 = vmatpush1.bf16.msra.mxu0 0
        %679 = vmatprep.subr.bf16.mxu0 0
        %680 = vmatpush1.bf16.msra.mxu0 0
        %681 = vmatprep.mubr.bf16.mxu0 0
        %682 = vmatmul.mubr.bf16.gmra.mrb[0].mxu0 %v568
        %v683 = vpop.f32.mrb[0].mxu0
        %v684 = vadd.f32 %v599, %v683
        %v685 = vpop.f32.mrb[0].mxu0
        %v686 = vpop.f32.mrb[0].mxu0
        %v687 = vadd.f32 %v599, %v686
        %v688 = vpop.f32.mrb[0].mxu0
        %689 = vmatprep.mubr.bf16.mxu0 0
        %690 = vmatmul.mubr.bf16.gmra.mrb[0].mxu0 %v569
        %v691 = vpop.f32.mrb[0].mxu0
        %v692 = vadd.f32 %v599, %v691
        %v693 = vpop.f32.mrb[0].mxu0
        %v694 = vpop.f32.mrb[0].mxu0
        %v695 = vadd.f32 %v599, %v694
        %v696 = vpop.f32.mrb[0].mxu0
        %697 = vmatprep.mubr.bf16.mxu0 0
        %698 = vmatmul.mubr.bf16.gmra.mrb[0].mxu0 %v570
        %v699 = vpop.f32.mrb[0].mxu0
        %v700 = vadd.f32 %v599, %v699
        %v701 = vpop.f32.mrb[0].mxu0
        %v702 = vpop.f32.mrb[0].mxu0
        %v703 = vadd.f32 %v599, %v702
        %v704 = vpop.f32.mrb[0].mxu0
        %705 = vmatprep.mubr.bf16.mxu0 0
        %706 = vmatmul.mubr.bf16.gmra.mrb[0].mxu0 %v571
        %v707 = vpop.f32.mrb[0].mxu0
        %v708 = vadd.f32 %v599, %v707
        %v709 = vpop.f32.mrb[0].mxu0
        %v710 = vpop.f32.mrb[0].mxu0
        %v711 = vadd.f32 %v599, %v710
        %v712 = vpop.f32.mrb[0].mxu0
        %713 = vmatprep.mubr.bf16.mxu0 0
        %714 = vmatmul.mubr.bf16.gmra.mrb[0].mxu0 %v572
        %v715 = vpop.f32.mrb[0].mxu0
        %v716 = vadd.f32 %v599, %v715
        %v717 = vpop.f32.mrb[0].mxu0
        %v718 = vpop.f32.mrb[0].mxu0
        %v719 = vadd.f32 %v599, %v718
        %v720 = vpop.f32.mrb[0].mxu0
        %721 = vmatprep.mubr.bf16.mxu0 0
        %722 = vmatmul.mubr.bf16.gmra.mrb[0].mxu0 %v573
        %v723 = vpop.f32.mrb[0].mxu0
        %v724 = vadd.f32 %v599, %v723
        %v725 = vpop.f32.mrb[0].mxu0
        %v726 = vpop.f32.mrb[0].mxu0
        %v727 = vadd.f32 %v599, %v726
        %v728 = vpop.f32.mrb[0].mxu0
        %729 = vmatprep.mubr.bf16.mxu0 0
        %730 = vmatmul.mubr.bf16.gmra.mrb[0].mxu0 %v574
        %v731 = vpop.f32.mrb[0].mxu0
        %v732 = vadd.f32 %v599, %v731
        %v733 = vpop.f32.mrb[0].mxu0
        %v734 = vpop.f32.mrb[0].mxu0
        %v735 = vadd.f32 %v599, %v734
        %v736 = vpop.f32.mrb[0].mxu0
        %737 = vmatprep.mubr.bf16.mxu0 0
        %738 = vmatmul.mubr.bf16.gmra.mrb[0].mxu0 %v575
        %v739 = vpop.f32.mrb[0].mxu0
        %v740 = vadd.f32 %v599, %v739
        %v741 = vpop.f32.mrb[0].mxu0
        %v742 = vpop.f32.mrb[0].mxu0
        %v743 = vadd.f32 %v599, %v742
        %v744 = vpop.f32.mrb[0].mxu0
        %745 = vdwg.mxu0
        %v746 = vmax.f32 %v684, 0.0
        %v747 = vmax.f32 %v687, 0.0
        %v748 = vmax.f32 %v692, 0.0
        %v749 = vmax.f32 %v695, 0.0
        %v750 = vmax.f32 %v700, 0.0
        %v751 = vmax.f32 %v703, 0.0
        %v752 = vmax.f32 %v708, 0.0
        %v753 = vmax.f32 %v711, 0.0
        %v754 = vmax.f32 %v716, 0.0
        %v755 = vmax.f32 %v719, 0.0
        %v756 = vmax.f32 %v724, 0.0
        %v757 = vmax.f32 %v727, 0.0
        %v758 = vmax.f32 %v732, 0.0
        %v759 = vmax.f32 %v735, 0.0
        %v760 = vmax.f32 %v740, 0.0
        %v761 = vmax.f32 %v743, 0.0
        %v762 = vpack.c.bf16 %v747, %v746
        %v763 = vpack.c.bf16 %v749, %v748
        %v764 = vpack.c.bf16 %v751, %v750
        %v765 = vpack.c.bf16 %v753, %v752
        %v766 = vpack.c.bf16 %v755, %v754
        %v767 = vpack.c.bf16 %v757, %v756
        %v768 = vpack.c.bf16 %v759, %v758
        %v769 = vpack.c.bf16 %v761, %v760
        %s770 = scalar_lea.vmem %s1, 192
        %v771 = vld [vmem:[%s770] sm:$0xf]
        %v772 = vld [vmem:[%s770 + $0x4] sm:$0xf]
        %v773 = vld [vmem:[%s770 + $0x8] sm:$0xf]
        %v774 = vld [vmem:[%s770 + $0xc] sm:$0xf]
        %v775 = vld [vmem:[%s770 + $0x10] sm:$0xf]
        %v776 = vld [vmem:[%s770 + $0x14] sm:$0xf]
        %v777 = vld [vmem:[%s770 + $0x18] sm:$0xf]
        %v778 = vld [vmem:[%s770 + $0x1c] sm:$0xf]
        %v779 = vld [vmem:[%s770 + $0x20] sm:$0xf]
        %v780 = vld [vmem:[%s770 + $0x24] sm:$0xf]
        %v781 = vld [vmem:[%s770 + $0x28] sm:$0xf]
        %v782 = vld [vmem:[%s770 + $0x2c] sm:$0xf]
        %v783 = vld [vmem:[%s770 + $0x30] sm:$0xf]
        %v784 = vld [vmem:[%s770 + $0x34] sm:$0xf]
        %v785 = vld [vmem:[%s770 + $0x38] sm:$0xf]
        %v786 = vld [vmem:[%s770 + $0x3c] sm:$0xf]
        %s787 = scalar_lea.vmem %s2, 3
        %v788 = vld [vmem:[%s787] sm:$0x1]
        %v790 = vlaneseq
        %v791 = vshrl.u32 %v790, 7
        %v792 = vsub.s32 0, %v791
        %v793 = vrot.slane %v788, %v792
        %v811 = vunpack.c.l.b16 %v771
        %v812 = vunpack.c.l.b16 %v772
        %v813 = vunpack.c.l.b16 %v773
        %v814 = vunpack.c.l.b16 %v774
        %v815 = vunpack.c.l.b16 %v775
        %v816 = vunpack.c.l.b16 %v776
        %v817 = vunpack.c.l.b16 %v777
        %v818 = vunpack.c.l.b16 %v778
        %v819 = vunpack.c.l.b16 %v779
        %v820 = vunpack.c.l.b16 %v780
        %v821 = vunpack.c.l.b16 %v781
        %v822 = vunpack.c.l.b16 %v782
        %v823 = vunpack.c.l.b16 %v783
        %v824 = vunpack.c.l.b16 %v784
        %v825 = vunpack.c.l.b16 %v785
        %v826 = vunpack.c.l.b16 %v786
        %v827 = vpack.c.b16 %v812, %v811
        %v828 = vpack.c.b16 %v814, %v813
        %v829 = vpack.c.b16 %v816, %v815
        %v830 = vpack.c.b16 %v818, %v817
        %v831 = vpack.c.b16 %v820, %v819
        %v832 = vpack.c.b16 %v822, %v821
        %v833 = vpack.c.b16 %v824, %v823
        %v834 = vpack.c.b16 %v826, %v825
        %843 = vmatprep.subr.bf16.mxu0 0
        %844 = vmatpush1.bf16.msra.mxu0 %v827
        %845 = vmatprep.subr.bf16.mxu0 0
        %846 = vmatpush1.bf16.msra.mxu0 %v828
        %847 = vmatprep.subr.bf16.mxu0 0
        %848 = vmatpush1.bf16.msra.mxu0 %v829
        %849 = vmatprep.subr.bf16.mxu0 0
        %850 = vmatpush1.bf16.msra.mxu0 %v830
        %851 = vmatprep.subr.bf16.mxu0 0
        %852 = vmatpush1.bf16.msra.mxu0 %v831
        %853 = vmatprep.subr.bf16.mxu0 0
        %854 = vmatpush1.bf16.msra.mxu0 %v832
        %855 = vmatprep.subr.bf16.mxu0 0
        %856 = vmatpush1.bf16.msra.mxu0 %v833
        %857 = vmatprep.subr.bf16.mxu0 0
        %858 = vmatpush1.bf16.msra.mxu0 %v834
        %859 = vmatprep.subr.bf16.mxu0 0
        %860 = vmatpush1.bf16.msra.mxu0 0
        %861 = vmatprep.subr.bf16.mxu0 0
        %862 = vmatpush1.bf16.msra.mxu0 0
        %863 = vmatprep.subr.bf16.mxu0 0
        %864 = vmatpush1.bf16.msra.mxu0 0
        %865 = vmatprep.subr.bf16.mxu0 0
        %866 = vmatpush1.bf16.msra.mxu0 0
        %867 = vmatprep.subr.bf16.mxu0 0
        %868 = vmatpush1.bf16.msra.mxu0 0
        %869 = vmatprep.subr.bf16.mxu0 0
        %870 = vmatpush1.bf16.msra.mxu0 0
        %871 = vmatprep.subr.bf16.mxu0 0
        %872 = vmatpush1.bf16.msra.mxu0 0
        %873 = vmatprep.subr.bf16.mxu0 0
        %874 = vmatpush1.bf16.msra.mxu0 0
        %875 = vmatprep.mubr.bf16.mxu0 0
        %876 = vmatmul.mubr.bf16.gmra.mrb[0].mxu0 %v762
        %v877 = vpop.f32.mrb[0].mxu0
        %v878 = vadd.f32 %v793, %v877
        %v879 = vpop.f32.mrb[0].mxu0
        %v880 = vpop.f32.mrb[0].mxu0
        %v881 = vadd.f32 %v793, %v880
        %v882 = vpop.f32.mrb[0].mxu0
        %883 = vmatprep.mubr.bf16.mxu0 0
        %884 = vmatmul.mubr.bf16.gmra.mrb[0].mxu0 %v763
        %v885 = vpop.f32.mrb[0].mxu0
        %v886 = vadd.f32 %v793, %v885
        %v887 = vpop.f32.mrb[0].mxu0
        %v888 = vpop.f32.mrb[0].mxu0
        %v889 = vadd.f32 %v793, %v888
        %v890 = vpop.f32.mrb[0].mxu0
        %891 = vmatprep.mubr.bf16.mxu0 0
        %892 = vmatmul.mubr.bf16.gmra.mrb[0].mxu0 %v764
        %v893 = vpop.f32.mrb[0].mxu0
        %v894 = vadd.f32 %v793, %v893
        %v895 = vpop.f32.mrb[0].mxu0
        %v896 = vpop.f32.mrb[0].mxu0
        %v897 = vadd.f32 %v793, %v896
        %v898 = vpop.f32.mrb[0].mxu0
        %899 = vmatprep.mubr.bf16.mxu0 0
        %900 = vmatmul.mubr.bf16.gmra.mrb[0].mxu0 %v765
        %v901 = vpop.f32.mrb[0].mxu0
        %v902 = vadd.f32 %v793, %v901
        %v903 = vpop.f32.mrb[0].mxu0
        %v904 = vpop.f32.mrb[0].mxu0
        %v905 = vadd.f32 %v793, %v904
        %v906 = vpop.f32.mrb[0].mxu0
        %907 = vmatprep.mubr.bf16.mxu0 0
        %908 = vmatmul.mubr.bf16.gmra.mrb[0].mxu0 %v766
        %v909 = vpop.f32.mrb[0].mxu0
        %v910 = vadd.f32 %v793, %v909
        %v911 = vpop.f32.mrb[0].mxu0
        %v912 = vpop.f32.mrb[0].mxu0
        %v913 = vadd.f32 %v793, %v912
        %v914 = vpop.f32.mrb[0].mxu0
        %915 = vmatprep.mubr.bf16.mxu0 0
        %916 = vmatmul.mubr.bf16.gmra.mrb[0].mxu0 %v767
        %v917 = vpop.f32.mrb[0].mxu0
        %v918 = vadd.f32 %v793, %v917
        %v919 = vpop.f32.mrb[0].mxu0
        %v920 = vpop.f32.mrb[0].mxu0
        %v921 = vadd.f32 %v793, %v920
        %v922 = vpop.f32.mrb[0].mxu0
        %923 = vmatprep.mubr.bf16.mxu0 0
        %924 = vmatmul.mubr.bf16.gmra.mrb[0].mxu0 %v768
        %v925 = vpop.f32.mrb[0].mxu0
        %v926 = vadd.f32 %v793, %v925
        %v927 = vpop.f32.mrb[0].mxu0
        %v928 = vpop.f32.mrb[0].mxu0
        %v929 = vadd.f32 %v793, %v928
        %v930 = vpop.f32.mrb[0].mxu0
        %931 = vmatprep.mubr.bf16.mxu0 0
        %932 = vmatmul.mubr.bf16.gmra.mrb[0].mxu0 %v769
        %v933 = vpop.f32.mrb[0].mxu0
        %v934 = vadd.f32 %v793, %v933
        %v935 = vpop.f32.mrb[0].mxu0
        %v936 = vpop.f32.mrb[0].mxu0
        %v937 = vadd.f32 %v793, %v936
        %v938 = vpop.f32.mrb[0].mxu0
        %939 = vdwg.mxu0
        %v940 = vmax.f32 %v878, 0.0
        %v941 = vmax.f32 %v881, 0.0
        %v942 = vmax.f32 %v886, 0.0
        %v943 = vmax.f32 %v889, 0.0
        %v944 = vmax.f32 %v894, 0.0
        %v945 = vmax.f32 %v897, 0.0
        %v946 = vmax.f32 %v902, 0.0
        %v947 = vmax.f32 %v905, 0.0
        %v948 = vmax.f32 %v910, 0.0
        %v949 = vmax.f32 %v913, 0.0
        %v950 = vmax.f32 %v918, 0.0
        %v951 = vmax.f32 %v921, 0.0
        %v952 = vmax.f32 %v926, 0.0
        %v953 = vmax.f32 %v929, 0.0
        %v954 = vmax.f32 %v934, 0.0
        %v955 = vmax.f32 %v937, 0.0
        %v956 = vpack.c.bf16 %v941, %v940
        %v957 = vpack.c.bf16 %v943, %v942
        %v958 = vpack.c.bf16 %v945, %v944
        %v959 = vpack.c.bf16 %v947, %v946
        %v960 = vpack.c.bf16 %v949, %v948
        %v961 = vpack.c.bf16 %v951, %v950
        %v962 = vpack.c.bf16 %v953, %v952
        %v963 = vpack.c.bf16 %v955, %v954
        %s964 = scalar_lea.vmem %s1, 256
        %v965 = vld [vmem:[%s964] sm:$0xf]
        %v966 = vld [vmem:[%s964 + $0x4] sm:$0xf]
        %v967 = vld [vmem:[%s964 + $0x8] sm:$0xf]
        %v968 = vld [vmem:[%s964 + $0xc] sm:$0xf]
        %v969 = vld [vmem:[%s964 + $0x10] sm:$0xf]
        %v970 = vld [vmem:[%s964 + $0x14] sm:$0xf]
        %v971 = vld [vmem:[%s964 + $0x18] sm:$0xf]
        %v972 = vld [vmem:[%s964 + $0x1c] sm:$0xf]
        %v973 = vld [vmem:[%s964 + $0x20] sm:$0xf]
        %v974 = vld [vmem:[%s964 + $0x24] sm:$0xf]
        %v975 = vld [vmem:[%s964 + $0x28] sm:$0xf]
        %v976 = vld [vmem:[%s964 + $0x2c] sm:$0xf]
        %v977 = vld [vmem:[%s964 + $0x30] sm:$0xf]
        %v978 = vld [vmem:[%s964 + $0x34] sm:$0xf]
        %v979 = vld [vmem:[%s964 + $0x38] sm:$0xf]
        %v980 = vld [vmem:[%s964 + $0x3c] sm:$0xf]
        %s981 = scalar_lea.vmem %s2, 4
        %v982 = vld [vmem:[%s981] sm:$0x1]
        %v984 = vlaneseq
        %v985 = vshrl.u32 %v984, 7
        %v986 = vsub.s32 0, %v985
        %v987 = vrot.slane %v982, %v986
        %v1005 = vunpack.c.l.b16 %v965
        %v1006 = vunpack.c.l.b16 %v966
        %v1007 = vunpack.c.l.b16 %v967
        %v1008 = vunpack.c.l.b16 %v968
        %v1009 = vunpack.c.l.b16 %v969
        %v1010 = vunpack.c.l.b16 %v970
        %v1011 = vunpack.c.l.b16 %v971
        %v1012 = vunpack.c.l.b16 %v972
        %v1013 = vunpack.c.l.b16 %v973
        %v1014 = vunpack.c.l.b16 %v974
        %v1015 = vunpack.c.l.b16 %v975
        %v1016 = vunpack.c.l.b16 %v976
        %v1017 = vunpack.c.l.b16 %v977
        %v1018 = vunpack.c.l.b16 %v978
        %v1019 = vunpack.c.l.b16 %v979
        %v1020 = vunpack.c.l.b16 %v980
        %v1021 = vpack.c.b16 %v1006, %v1005
        %v1022 = vpack.c.b16 %v1008, %v1007
        %v1023 = vpack.c.b16 %v1010, %v1009
        %v1024 = vpack.c.b16 %v1012, %v1011
        %v1025 = vpack.c.b16 %v1014, %v1013
        %v1026 = vpack.c.b16 %v1016, %v1015
        %v1027 = vpack.c.b16 %v1018, %v1017
        %v1028 = vpack.c.b16 %v1020, %v1019
        %1037 = vmatprep.subr.bf16.mxu0 0
        %1038 = vmatpush1.bf16.msra.mxu0 %v1021
        %1039 = vmatprep.subr.bf16.mxu0 0
        %1040 = vmatpush1.bf16.msra.mxu0 %v1022
        %1041 = vmatprep.subr.bf16.mxu0 0
        %1042 = vmatpush1.bf16.msra.mxu0 %v1023
        %1043 = vmatprep.subr.bf16.mxu0 0
        %1044 = vmatpush1.bf16.msra.mxu0 %v1024
        %1045 = vmatprep.subr.bf16.mxu0 0
        %1046 = vmatpush1.bf16.msra.mxu0 %v1025
        %1047 = vmatprep.subr.bf16.mxu0 0
        %1048 = vmatpush1.bf16.msra.mxu0 %v1026
        %1049 = vmatprep.subr.bf16.mxu0 0
        %1050 = vmatpush1.bf16.msra.mxu0 %v1027
        %1051 = vmatprep.subr.bf16.mxu0 0
        %1052 = vmatpush1.bf16.msra.mxu0 %v1028
        %1053 = vmatprep.subr.bf16.mxu0 0
        %1054 = vmatpush1.bf16.msra.mxu0 0
        %1055 = vmatprep.subr.bf16.mxu0 0
        %1056 = vmatpush1.bf16.msra.mxu0 0
        %1057 = vmatprep.subr.bf16.mxu0 0
        %1058 = vmatpush1.bf16.msra.mxu0 0
        %1059 = vmatprep.subr.bf16.mxu0 0
        %1060 = vmatpush1.bf16.msra.mxu0 0
        %1061 = vmatprep.subr.bf16.mxu0 0
        %1062 = vmatpush1.bf16.msra.mxu0 0
        %1063 = vmatprep.subr.bf16.mxu0 0
        %1064 = vmatpush1.bf16.msra.mxu0 0
        %1065 = vmatprep.subr.bf16.mxu0 0
        %1066 = vmatpush1.bf16.msra.mxu0 0
        %1067 = vmatprep.subr.bf16.mxu0 0
        %1068 = vmatpush1.bf16.msra.mxu0 0
        %1069 = vmatprep.mubr.bf16.mxu0 0
        %1070 = vmatmul.mubr.bf16.gmra.mrb[0].mxu0 %v956
        %v1071 = vpop.f32.mrb[0].mxu0
        %v1072 = vadd.f32 %v987, %v1071
        %v1073 = vpop.f32.mrb[0].mxu0
        %v1074 = vpop.f32.mrb[0].mxu0
        %v1075 = vadd.f32 %v987, %v1074
        %v1076 = vpop.f32.mrb[0].mxu0
        %1077 = vmatprep.mubr.bf16.mxu0 0
        %1078 = vmatmul.mubr.bf16.gmra.mrb[0].mxu0 %v957
        %v1079 = vpop.f32.mrb[0].mxu0
        %v1080 = vadd.f32 %v987, %v1079
        %v1081 = vpop.f32.mrb[0].mxu0
        %v1082 = vpop.f32.mrb[0].mxu0
        %v1083 = vadd.f32 %v987, %v1082
        %v1084 = vpop.f32.mrb[0].mxu0
        %1085 = vmatprep.mubr.bf16.mxu0 0
        %1086 = vmatmul.mubr.bf16.gmra.mrb[0].mxu0 %v958
        %v1087 = vpop.f32.mrb[0].mxu0
        %v1088 = vadd.f32 %v987, %v1087
        %v1089 = vpop.f32.mrb[0].mxu0
        %v1090 = vpop.f32.mrb[0].mxu0
        %v1091 = vadd.f32 %v987, %v1090
        %v1092 = vpop.f32.mrb[0].mxu0
        %1093 = vmatprep.mubr.bf16.mxu0 0
        %1094 = vmatmul.mubr.bf16.gmra.mrb[0].mxu0 %v959
        %v1095 = vpop.f32.mrb[0].mxu0
        %v1096 = vadd.f32 %v987, %v1095
        %v1097 = vpop.f32.mrb[0].mxu0
        %v1098 = vpop.f32.mrb[0].mxu0
        %v1099 = vadd.f32 %v987, %v1098
        %v1100 = vpop.f32.mrb[0].mxu0
        %1101 = vmatprep.mubr.bf16.mxu0 0
        %1102 = vmatmul.mubr.bf16.gmra.mrb[0].mxu0 %v960
        %v1103 = vpop.f32.mrb[0].mxu0
        %v1104 = vadd.f32 %v987, %v1103
        %v1105 = vpop.f32.mrb[0].mxu0
        %v1106 = vpop.f32.mrb[0].mxu0
        %v1107 = vadd.f32 %v987, %v1106
        %v1108 = vpop.f32.mrb[0].mxu0
        %1109 = vmatprep.mubr.bf16.mxu0 0
        %1110 = vmatmul.mubr.bf16.gmra.mrb[0].mxu0 %v961
        %v1111 = vpop.f32.mrb[0].mxu0
        %v1112 = vadd.f32 %v987, %v1111
        %v1113 = vpop.f32.mrb[0].mxu0
        %v1114 = vpop.f32.mrb[0].mxu0
        %v1115 = vadd.f32 %v987, %v1114
        %v1116 = vpop.f32.mrb[0].mxu0
        %1117 = vmatprep.mubr.bf16.mxu0 0
        %1118 = vmatmul.mubr.bf16.gmra.mrb[0].mxu0 %v962
        %v1119 = vpop.f32.mrb[0].mxu0
        %v1120 = vadd.f32 %v987, %v1119
        %v1121 = vpop.f32.mrb[0].mxu0
        %v1122 = vpop.f32.mrb[0].mxu0
        %v1123 = vadd.f32 %v987, %v1122
        %v1124 = vpop.f32.mrb[0].mxu0
        %1125 = vmatprep.mubr.bf16.mxu0 0
        %1126 = vmatmul.mubr.bf16.gmra.mrb[0].mxu0 %v963
        %v1127 = vpop.f32.mrb[0].mxu0
        %v1128 = vadd.f32 %v987, %v1127
        %v1129 = vpop.f32.mrb[0].mxu0
        %v1130 = vpop.f32.mrb[0].mxu0
        %v1131 = vadd.f32 %v987, %v1130
        %v1132 = vpop.f32.mrb[0].mxu0
        %1133 = vdwg.mxu0
        %v1134 = vmax.f32 %v1072, 0.0
        %v1135 = vmax.f32 %v1075, 0.0
        %v1136 = vmax.f32 %v1080, 0.0
        %v1137 = vmax.f32 %v1083, 0.0
        %v1138 = vmax.f32 %v1088, 0.0
        %v1139 = vmax.f32 %v1091, 0.0
        %v1140 = vmax.f32 %v1096, 0.0
        %v1141 = vmax.f32 %v1099, 0.0
        %v1142 = vmax.f32 %v1104, 0.0
        %v1143 = vmax.f32 %v1107, 0.0
        %v1144 = vmax.f32 %v1112, 0.0
        %v1145 = vmax.f32 %v1115, 0.0
        %v1146 = vmax.f32 %v1120, 0.0
        %v1147 = vmax.f32 %v1123, 0.0
        %v1148 = vmax.f32 %v1128, 0.0
        %v1149 = vmax.f32 %v1131, 0.0
        %v1150 = vpack.c.bf16 %v1135, %v1134
        %v1151 = vpack.c.bf16 %v1137, %v1136
        %v1152 = vpack.c.bf16 %v1139, %v1138
        %v1153 = vpack.c.bf16 %v1141, %v1140
        %v1154 = vpack.c.bf16 %v1143, %v1142
        %v1155 = vpack.c.bf16 %v1145, %v1144
        %v1156 = vpack.c.bf16 %v1147, %v1146
        %v1157 = vpack.c.bf16 %v1149, %v1148
        %s1158 = scalar_lea.vmem %s1, 320
        %v1159 = vld [vmem:[%s1158] sm:$0xf]
        %v1160 = vld [vmem:[%s1158 + $0x4] sm:$0xf]
        %v1161 = vld [vmem:[%s1158 + $0x8] sm:$0xf]
        %v1162 = vld [vmem:[%s1158 + $0xc] sm:$0xf]
        %v1163 = vld [vmem:[%s1158 + $0x10] sm:$0xf]
        %v1164 = vld [vmem:[%s1158 + $0x14] sm:$0xf]
        %v1165 = vld [vmem:[%s1158 + $0x18] sm:$0xf]
        %v1166 = vld [vmem:[%s1158 + $0x1c] sm:$0xf]
        %v1167 = vld [vmem:[%s1158 + $0x20] sm:$0xf]
        %v1168 = vld [vmem:[%s1158 + $0x24] sm:$0xf]
        %v1169 = vld [vmem:[%s1158 + $0x28] sm:$0xf]
        %v1170 = vld [vmem:[%s1158 + $0x2c] sm:$0xf]
        %v1171 = vld [vmem:[%s1158 + $0x30] sm:$0xf]
        %v1172 = vld [vmem:[%s1158 + $0x34] sm:$0xf]
        %v1173 = vld [vmem:[%s1158 + $0x38] sm:$0xf]
        %v1174 = vld [vmem:[%s1158 + $0x3c] sm:$0xf]
        %s1175 = scalar_lea.vmem %s2, 5
        %v1176 = vld [vmem:[%s1175] sm:$0x1]
        %v1178 = vlaneseq
        %v1179 = vshrl.u32 %v1178, 7
        %v1180 = vsub.s32 0, %v1179
        %v1181 = vrot.slane %v1176, %v1180
        %v1199 = vunpack.c.l.b16 %v1159
        %v1200 = vunpack.c.l.b16 %v1160
        %v1201 = vunpack.c.l.b16 %v1161
        %v1202 = vunpack.c.l.b16 %v1162
        %v1203 = vunpack.c.l.b16 %v1163
        %v1204 = vunpack.c.l.b16 %v1164
        %v1205 = vunpack.c.l.b16 %v1165
        %v1206 = vunpack.c.l.b16 %v1166
        %v1207 = vunpack.c.l.b16 %v1167
        %v1208 = vunpack.c.l.b16 %v1168
        %v1209 = vunpack.c.l.b16 %v1169
        %v1210 = vunpack.c.l.b16 %v1170
        %v1211 = vunpack.c.l.b16 %v1171
        %v1212 = vunpack.c.l.b16 %v1172
        %v1213 = vunpack.c.l.b16 %v1173
        %v1214 = vunpack.c.l.b16 %v1174
        %v1215 = vpack.c.b16 %v1200, %v1199
        %v1216 = vpack.c.b16 %v1202, %v1201
        %v1217 = vpack.c.b16 %v1204, %v1203
        %v1218 = vpack.c.b16 %v1206, %v1205
        %v1219 = vpack.c.b16 %v1208, %v1207
        %v1220 = vpack.c.b16 %v1210, %v1209
        %v1221 = vpack.c.b16 %v1212, %v1211
        %v1222 = vpack.c.b16 %v1214, %v1213
        %1231 = vmatprep.subr.bf16.mxu0 0
        %1232 = vmatpush1.bf16.msra.mxu0 %v1215
        %1233 = vmatprep.subr.bf16.mxu0 0
        %1234 = vmatpush1.bf16.msra.mxu0 %v1216
        %1235 = vmatprep.subr.bf16.mxu0 0
        %1236 = vmatpush1.bf16.msra.mxu0 %v1217
        %1237 = vmatprep.subr.bf16.mxu0 0
        %1238 = vmatpush1.bf16.msra.mxu0 %v1218
        %1239 = vmatprep.subr.bf16.mxu0 0
        %1240 = vmatpush1.bf16.msra.mxu0 %v1219
        %1241 = vmatprep.subr.bf16.mxu0 0
        %1242 = vmatpush1.bf16.msra.mxu0 %v1220
        %1243 = vmatprep.subr.bf16.mxu0 0
        %1244 = vmatpush1.bf16.msra.mxu0 %v1221
        %1245 = vmatprep.subr.bf16.mxu0 0
        %1246 = vmatpush1.bf16.msra.mxu0 %v1222
        %1247 = vmatprep.subr.bf16.mxu0 0
        %1248 = vmatpush1.bf16.msra.mxu0 0
        %1249 = vmatprep.subr.bf16.mxu0 0
        %1250 = vmatpush1.bf16.msra.mxu0 0
        %1251 = vmatprep.subr.bf16.mxu0 0
        %1252 = vmatpush1.bf16.msra.mxu0 0
        %1253 = vmatprep.subr.bf16.mxu0 0
        %1254 = vmatpush1.bf16.msra.mxu0 0
        %1255 = vmatprep.subr.bf16.mxu0 0
        %1256 = vmatpush1.bf16.msra.mxu0 0
        %1257 = vmatprep.subr.bf16.mxu0 0
        %1258 = vmatpush1.bf16.msra.mxu0 0
        %1259 = vmatprep.subr.bf16.mxu0 0
        %1260 = vmatpush1.bf16.msra.mxu0 0
        %1261 = vmatprep.subr.bf16.mxu0 0
        %1262 = vmatpush1.bf16.msra.mxu0 0
        %1263 = vmatprep.mubr.bf16.mxu0 0
        %1264 = vmatmul.mubr.bf16.gmra.mrb[0].mxu0 %v1150
        %v1265 = vpop.f32.mrb[0].mxu0
        %v1266 = vadd.f32 %v1181, %v1265
        %v1267 = vpop.f32.mrb[0].mxu0
        %v1268 = vpop.f32.mrb[0].mxu0
        %v1269 = vadd.f32 %v1181, %v1268
        %v1270 = vpop.f32.mrb[0].mxu0
        %1271 = vmatprep.mubr.bf16.mxu0 0
        %1272 = vmatmul.mubr.bf16.gmra.mrb[0].mxu0 %v1151
        %v1273 = vpop.f32.mrb[0].mxu0
        %v1274 = vadd.f32 %v1181, %v1273
        %v1275 = vpop.f32.mrb[0].mxu0
        %v1276 = vpop.f32.mrb[0].mxu0
        %v1277 = vadd.f32 %v1181, %v1276
        %v1278 = vpop.f32.mrb[0].mxu0
        %1279 = vmatprep.mubr.bf16.mxu0 0
        %1280 = vmatmul.mubr.bf16.gmra.mrb[0].mxu0 %v1152
        %v1281 = vpop.f32.mrb[0].mxu0
        %v1282 = vadd.f32 %v1181, %v1281
        %v1283 = vpop.f32.mrb[0].mxu0
        %v1284 = vpop.f32.mrb[0].mxu0
        %v1285 = vadd.f32 %v1181, %v1284
        %v1286 = vpop.f32.mrb[0].mxu0
        %1287 = vmatprep.mubr.bf16.mxu0 0
        %1288 = vmatmul.mubr.bf16.gmra.mrb[0].mxu0 %v1153
        %v1289 = vpop.f32.mrb[0].mxu0
        %v1290 = vadd.f32 %v1181, %v1289
        %v1291 = vpop.f32.mrb[0].mxu0
        %v1292 = vpop.f32.mrb[0].mxu0
        %v1293 = vadd.f32 %v1181, %v1292
        %v1294 = vpop.f32.mrb[0].mxu0
        %1295 = vmatprep.mubr.bf16.mxu0 0
        %1296 = vmatmul.mubr.bf16.gmra.mrb[0].mxu0 %v1154
        %v1297 = vpop.f32.mrb[0].mxu0
        %v1298 = vadd.f32 %v1181, %v1297
        %v1299 = vpop.f32.mrb[0].mxu0
        %v1300 = vpop.f32.mrb[0].mxu0
        %v1301 = vadd.f32 %v1181, %v1300
        %v1302 = vpop.f32.mrb[0].mxu0
        %1303 = vmatprep.mubr.bf16.mxu0 0
        %1304 = vmatmul.mubr.bf16.gmra.mrb[0].mxu0 %v1155
        %v1305 = vpop.f32.mrb[0].mxu0
        %v1306 = vadd.f32 %v1181, %v1305
        %v1307 = vpop.f32.mrb[0].mxu0
        %v1308 = vpop.f32.mrb[0].mxu0
        %v1309 = vadd.f32 %v1181, %v1308
        %v1310 = vpop.f32.mrb[0].mxu0
        %1311 = vmatprep.mubr.bf16.mxu0 0
        %1312 = vmatmul.mubr.bf16.gmra.mrb[0].mxu0 %v1156
        %v1313 = vpop.f32.mrb[0].mxu0
        %v1314 = vadd.f32 %v1181, %v1313
        %v1315 = vpop.f32.mrb[0].mxu0
        %v1316 = vpop.f32.mrb[0].mxu0
        %v1317 = vadd.f32 %v1181, %v1316
        %v1318 = vpop.f32.mrb[0].mxu0
        %1319 = vmatprep.mubr.bf16.mxu0 0
        %1320 = vmatmul.mubr.bf16.gmra.mrb[0].mxu0 %v1157
        %v1321 = vpop.f32.mrb[0].mxu0
        %v1322 = vadd.f32 %v1181, %v1321
        %v1323 = vpop.f32.mrb[0].mxu0
        %v1324 = vpop.f32.mrb[0].mxu0
        %v1325 = vadd.f32 %v1181, %v1324
        %v1326 = vpop.f32.mrb[0].mxu0
        %1327 = vdwg.mxu0
        %v1328 = vmax.f32 %v1266, 0.0
        %v1329 = vmax.f32 %v1269, 0.0
        %v1330 = vmax.f32 %v1274, 0.0
        %v1331 = vmax.f32 %v1277, 0.0
        %v1332 = vmax.f32 %v1282, 0.0
        %v1333 = vmax.f32 %v1285, 0.0
        %v1334 = vmax.f32 %v1290, 0.0
        %v1335 = vmax.f32 %v1293, 0.0
        %v1336 = vmax.f32 %v1298, 0.0
        %v1337 = vmax.f32 %v1301, 0.0
        %v1338 = vmax.f32 %v1306, 0.0
        %v1339 = vmax.f32 %v1309, 0.0
        %v1340 = vmax.f32 %v1314, 0.0
        %v1341 = vmax.f32 %v1317, 0.0
        %v1342 = vmax.f32 %v1322, 0.0
        %v1343 = vmax.f32 %v1325, 0.0
        %1344 = vst [vmem:[%s164] sm:$0xff] %v1328
        %1345 = vst [vmem:[%s164 + $0x8] sm:$0xff] %v1329
        %1346 = vst [vmem:[%s164 + $0x10] sm:$0xff] %v1330
        %1347 = vst [vmem:[%s164 + $0x18] sm:$0xff] %v1331
        %1348 = vst [vmem:[%s164 + $0x20] sm:$0xff] %v1332
        %1349 = vst [vmem:[%s164 + $0x28] sm:$0xff] %v1333
        %1350 = vst [vmem:[%s164 + $0x30] sm:$0xff] %v1334
        %1351 = vst [vmem:[%s164 + $0x38] sm:$0xff] %v1335
        %1352 = vst [vmem:[%s164 + $0x40] sm:$0xff] %v1336
        %1353 = vst [vmem:[%s164 + $0x48] sm:$0xff] %v1337
        %1354 = vst [vmem:[%s164 + $0x50] sm:$0xff] %v1338
        %1355 = vst [vmem:[%s164 + $0x58] sm:$0xff] %v1339
        %1356 = vst [vmem:[%s164 + $0x60] sm:$0xff] %v1340
        %1357 = vst [vmem:[%s164 + $0x68] sm:$0xff] %v1341
        %1358 = vst [vmem:[%s164 + $0x70] sm:$0xff] %v1342
        %1359 = vst [vmem:[%s164 + $0x78] sm:$0xff] %v1343
        %s1360 = sand.u32 %s93, 1
        %s1361 = scalar_lea.sflag [#allocation3], %s1360
        %s1362 = sand.u32 %s93, 1
        %s1363 = smul.addr %s1362, 128
        %s1364 = scalar_lea.vmem [#allocation2], %s1363
        // Predicated region
        $region33: #{tpu_custom_call.1} parent=31 // pred_check
          %p1365 = pneg %p103
        $region34: #{tpu_custom_call.1} parent=31 // pred_check_branch
          %1367 = sbr.rel (%p1365) target = $region36
        $region35: #{tpu_custom_call.1} parent=31 // pred_region
          %s1368 = smul.u32 16, %s17
          %s1370 = ssub.s32 2048, 2048
          %1371 = vsyncadd %s1361, %s1370
          %s1372 = smul.addr %s1368, 128
          %s1373 = scalar_lea.hbm %s3, %s1372
          %s1374 = sshll.u32 %s1364, 4
          %s1375 = int_to_ptr.vmem [resolvable:$true] %s1374
          %1380 = dma.vmem_to_hbm [thread:$0]  %s1375, 2048, %s1373, %s1361, 128, 128, 8
        $region36: #{tpu_custom_call.1} parent=31 // pred_fallthru
          _
      $region32: #{tpu_custom_call.1} parent=5 // pred_fallthru
        _
      %p1381 = scmp.le.s32.totalorder 2, %s12
      // Predicated region
      $region37: #{tpu_custom_call.1} parent=5 // pred_check
        %p1382 = pneg %p1381
      $region38: #{tpu_custom_call.1} parent=5 // pred_check_branch
        %1384 = sbr.rel (%p1382) target = $region40
      $region39: #{tpu_custom_call.1} parent=5 // pred_region
        %s1385 = ssub.s32 %s12, 2
        // Predicated region
        $region41: #{tpu_custom_call.1} parent=39 // pred_check
          %p1386 = pneg %p109
        $region42: #{tpu_custom_call.1} parent=39 // pred_check_branch
          %1388 = sbr.rel (%p1386) target = $region44
        $region43: #{tpu_custom_call.1} parent=39 // pred_region
          %s1389 = sand.u32 %s94, 1
          %s1390 = scalar_lea.sflag [#allocation3], %s1389
          %s1391 = sand.u32 %s94, 1
          %s1392 = smul.addr %s1391, 128
          %s1393 = scalar_lea.vmem [#allocation2], %s1392
          %1394 = dma.done %s1390, 2048
        $region44: #{tpu_custom_call.1} parent=39 // pred_fallthru
          _
      $region40: #{tpu_custom_call.1} parent=5 // pred_fallthru
        _
    $region6: #{tpu_custom_call.1} parent=1 // loop_footer
      %s16 = sadd.s32 1, %s12
    $region7: #{tpu_custom_call.1} parent=1 // loop_footer_branch
      %11 = sbr.rel target = $region3
    $region8: #{tpu_custom_call.1} parent=1 // loop_exit
      _
    %1395 = vsyncpa [#allocation3], 1
    %s1396 = scalar_lea.sflag [#allocation3], 1
    %1397 = vsyncpa %s1396, 1

</llo_original>
